<compile_context>
chip_gen: v7x
topology: tpu7x:2x2x1
jax: 0.10.0
libtpu: 0.0.40
codegen_flags: <defaults>
</compile_context>

<pallas_src>
import numpy as np
import jax
import jax.numpy as jnp
from jax.experimental import pallas as pl

# ---------------- synthetic cfg (mirrors RoINet.__init__) -------------------
POOL_H = 4                      # p (row bins)
POOL_W = 4                      # q (col bins)
SAMPLING = 2
CLASS_NUM = 3                   # foreground classes (cfg.class_num)
NUM_CLS = CLASS_NUM + 1         # + background
HIDDEN = 32
BOX_WEIGHT = (10.0, 10.0, 5.0, 5.0)   # cfg.box_weight
BOX_CODE_CLIP = None            # module uses AnchorBoxesCoder(box_code_clip=None)
SCORE_THRE = 0.05               # cfg.score_thre
STRIDE = 8                      # single FPN level for this synthetic example

C = 4                           # feature channels
H = 16
W = 16
B = 2                           # images
R_PER_IM = 8
R = B * R_PER_IM                # 16 ROIs
PQ = POOL_H * POOL_W            # 16
D_FLAT = C * PQ                 # 64

# ----- packing constants -----
CW = C * W                                            # 64
PCW = POOL_H * CW                                     # 256   (tmpy lanes: p, c, w)
WXT_LANES = POOL_W * PCW                              # 1024
WYB_LANES = POOL_H * B * H                            # 128
DEC_LANES = 4 * CLASS_NUM                             # 12
PERROI_LANES = WXT_LANES + WYB_LANES + 3 * DEC_LANES  # 1188
HEAD_W = NUM_CLS + 4 * NUM_CLS + 2 * DEC_LANES        # 4 + 16 + 24 = 44
PREP_LANES = max(HIDDEN, HEAD_W)                      # 44

# packed parameter/constant slab row offsets
OFF_SR = 0
OFF_W1 = OFF_SR + PCW          # 256
OFF_W2 = OFF_W1 + D_FLAT       # 320
OFF_WH = OFF_W2 + HIDDEN       # 352
OFF_B = OFF_WH + HIDDEN        # 384
PREP_ROWS = OFF_B + 8          # 392

# packed output slab lane offsets
O_ROIS = 0
O_LOGIT = O_ROIS + D_FLAT          # 64
O_DELTA = O_LOGIT + NUM_CLS        # 68
O_SCORE = O_DELTA + 4 * NUM_CLS    # 84
O_BOX = O_SCORE + CLASS_NUM        # 87
O_END = O_BOX + DEC_LANES          # 99
OUT_LANES = 128                    # lane-dense slab (unmasked store)


# ------------------------- JAX glue: interpolation weights ------------------
def _interp_weights_1d(starts, ends, pool, size, stride, sampling):
    """Per-ROI averaged bilinear interpolation weights along one axis: (R, pool, size).

    TODO(synk): mirrors the previous clip-to-[0,size-1] boundary handling; torchvision's
    `aligned=True` (-0.5 offset) / outside-sample zeroing variants are not reproduced here.
    """
    scale = 1.0 / stride
    start = starts * scale
    length = jnp.maximum(ends * scale - start, 1.0)
    bin_size = length / pool
    s_idx = (jnp.arange(sampling, dtype=jnp.float32) + 0.5) / sampling      # (S,)
    p_idx = jnp.arange(pool, dtype=jnp.float32)                             # (P,)
    pos = start[:, None, None] + (p_idx[None, :, None] + s_idx[None, None, :]) * bin_size[:, None, None]
    pos = jnp.clip(pos, 0.0, size - 1.0)                                    # (R, P, S)
    grid = jnp.arange(size, dtype=jnp.float32)                              # (size,)
    w = jnp.maximum(1.0 - jnp.abs(pos[..., None] - grid), 0.0)              # (R, P, S, size)
    return w.mean(axis=2).astype(jnp.float32)                               # (R, P, size)


# ------------------ one-time constants (folded into head / pooling) ---------
def _decode_selection_matrices():
    """Class-major decode selection (with 1/box_weight folded in).

    selA picks [dx,dy,dx,dy] per fg class, selB picks [dw,dh,dw,dh] per fg class, so the
    whole decode is elementwise in class-major lane order and background deltas are dropped
    (matches `bbox_pre_image[:, 4:]` in the PyTorch inference path).
    """
    selA = np.zeros((4 * NUM_CLS, DEC_LANES), np.float32)
    selB = np.zeros((4 * NUM_CLS, DEC_LANES), np.float32)
    for c in range(CLASS_NUM):
        for j in range(4):
            k_ctr = j % 2            # 0 -> dx, 1 -> dy
            k_size = 2 + (j % 2)     # 2 -> dw, 3 -> dh
            selA[4 * (c + 1) + k_ctr, c * 4 + j] = 1.0 / BOX_WEIGHT[k_ctr]
            selB[4 * (c + 1) + k_size, c * 4 + j] = 1.0 / BOX_WEIGHT[k_size]
    return jnp.asarray(selA), jnp.asarray(selB)


def _reduce_scatter_matrix():
    """(P*C*W, P*C) constant: reduces the pooled product over w and scatters (p,c) to lanes."""
    sr = np.zeros((PCW, POOL_H * C), np.float32)
    for p in range(POOL_H):
        for c in range(C):
            for w in range(W):
                sr[p * CW + c * W + w, p * C + c] = 1.0
    return sr


def prepare_params(params):
    """One-time parameter/constant packing (all weight-layout glue hoisted out of the call path)."""
    w1, b1, w2, b2, wc, bc, wb, bb = params
    # FC1 weight rows permuted from torch flatten(1) order (c,p,q) to the kernel's (q,p,c) lane order.
    w1k = w1.reshape(C, POOL_H, POOL_W, HIDDEN).transpose(2, 1, 0, 3).reshape(D_FLAT, HIDDEN)
    selA, selB = _decode_selection_matrices()
    whead = jnp.concatenate([wc, wb, wb @ selA, wb @ selB], axis=1)       # (32, 44)
    bhead = jnp.concatenate([bc, bb, bb @ selA, bb @ selB], axis=1)       # (1, 44)

    def pad_lanes(x):
        return jnp.pad(x, ((0, 0), (0, PREP_LANES - x.shape[1])))

    sr = jnp.asarray(_reduce_scatter_matrix())                            # (256, 16)
    biases = jnp.zeros((8, PREP_LANES), jnp.float32)
    biases = biases.at[0, :HIDDEN].set(b1[0])
    biases = biases.at[1, :HIDDEN].set(b2[0])
    biases = biases.at[2, :HEAD_W].set(bhead[0])
    prep = jnp.concatenate(
        [pad_lanes(sr), pad_lanes(w1k), pad_lanes(w2), pad_lanes(whead), biases], axis=0)
    assert prep.shape == (PREP_ROWS, PREP_LANES)
    return prep


# ------------------------------ fused kernel ---------------------------------
def roinet_kernel(perroi_ref, featblk_ref, prep_ref, out_ref):
    # perroi : (R, 1188) = [wxt(1024) | wyb(128) | ctr12 | size12 | half12]
    # featblk: (128, 256) block-diag kron(I_P, feat[b*H+h, c*W+w])
    # prep   : (392, 44)  = [SR | W1 | W2 | Whead | biases]  (packed, one-time)
    sr = prep_ref[OFF_SR:OFF_SR + PCW, 0:POOL_H * C]         # (256, 16)
    w1 = prep_ref[OFF_W1:OFF_W1 + D_FLAT, 0:HIDDEN]          # (64, 32)
    w2 = prep_ref[OFF_W2:OFF_W2 + HIDDEN, 0:HIDDEN]          # (32, 32)
    wh = prep_ref[OFF_WH:OFF_WH + HIDDEN, 0:HEAD_W]          # (32, 44)
    bias = prep_ref[OFF_B:OFF_B + 8, :]                      # (8, 44)
    b1 = bias[0:1, 0:HIDDEN]
    b2 = bias[1:2, 0:HIDDEN]
    bh = bias[2:3, 0:HEAD_W]

    # ---- ROI-Align: one-hot selection + y-pool as ONE matmul (p lands in lanes) ----
    wyb = perroi_ref[:, WXT_LANES:WXT_LANES + WYB_LANES]                          # (R, 128)
    tmpy = jnp.dot(wyb, featblk_ref[...], preferred_element_type=jnp.float32)     # (R, 256) lanes (p,c,w)

    # ---- x-pool: per-q broadcast multiply + constant reduce/scatter matmul ----
    pooled = []
    for q in range(POOL_W):                                   # static, Q=4
        prod = tmpy * perroi_ref[:, q * PCW:(q + 1) * PCW]    # (R, 256)
        pooled.append(jnp.dot(prod, sr, preferred_element_type=jnp.float32))      # (R, 16) lanes (p,c)
    rois_k = jnp.concatenate(pooled, axis=1)                  # (R, 64), kernel lane order (q,p,c)

    # ---- FC1 / FC2 / fused cls+box+decode head: one matmul each ----
    h1 = jnp.maximum(jnp.dot(rois_k, w1, preferred_element_type=jnp.float32) + b1, 0.0)
    h2 = jnp.maximum(jnp.dot(h1, w2, preferred_element_type=jnp.float32) + b2, 0.0)
    head = jnp.dot(h2, wh, preferred_element_type=jnp.float32) + bh               # (R, 44)

    c0 = NUM_CLS
    c1 = c0 + 4 * NUM_CLS
    c2 = c1 + DEC_LANES
    logits = head[:, 0:c0]                     # (R, 4)
    deltas = head[:, c0:c1]                    # (R, 16)  raw bbox_pre
    comps_ctr = head[:, c1:c2]                 # (R, 12)  class-major [dx,dy,dx,dy]/w
    comps_size = head[:, c2:c2 + DEC_LANES]    # (R, 12)  class-major [dw,dh,dw,dh]/w

    # ---- softmax over classes (approx reciprocal -> EUP) ----
    m = jnp.max(logits, axis=-1, keepdims=True)
    e = jnp.exp(logits - m)
    probs = e * pl.reciprocal(jnp.sum(e, axis=-1, keepdims=True), approx=True)
    scores = probs[:, 1:]                      # drop background, (R, 3)

    # ---- box decode: fully class-major, shuffle-free ----
    tail = perroi_ref[:, WXT_LANES + WYB_LANES:PERROI_LANES]  # (R, 36)
    ctr12 = tail[:, 0:DEC_LANES]               # [cx,cy,cx,cy] per class
    size12 = tail[:, DEC_LANES:2 * DEC_LANES]  # [pw,ph,pw,ph] per class
    half12 = tail[:, 2 * DEC_LANES:3 * DEC_LANES]  # [-.5pw,-.5ph,+.5pw,+.5ph] per class
    if BOX_CODE_CLIP is not None:              # module uses box_code_clip=None
        comps_size = jnp.minimum(comps_size, BOX_CODE_CLIP)
    boxes = ctr12 + comps_ctr * size12 + jnp.exp(comps_size) * half12   # (R, 12) = [x1,y1,x2,y2]*cls

    # ---- single lane-dense output slab, assembled in registers, one unmasked store ----
    pad = jnp.zeros((R, OUT_LANES - O_END), jnp.float32)
    out_ref[...] = jnp.concatenate([rois_k, logits, deltas, scores, boxes, pad], axis=1)


# ------------------------------- full forward --------------------------------
@jax.jit
def roinet_forward(features, proposals, batch_idx, prep):
    # --- per-call ROI-align weight construction (depends on proposals) ---
    wy = _interp_weights_1d(proposals[:, 1], proposals[:, 3], POOL_H, H, STRIDE, SAMPLING)  # (R,P,H)
    wx = _interp_weights_1d(proposals[:, 0], proposals[:, 2], POOL_W, W, STRIDE, SAMPLING)  # (R,Q,W)
    onehot = jax.nn.one_hot(batch_idx, B, dtype=jnp.float32)                                # (R,B)

    # one-hot image selection folded into the y weights (no in-kernel one-hot matmul)
    wyb = jnp.einsum('rb,rph->rpbh', onehot, wy).reshape(R, WYB_LANES)                      # (R,128)
    # x weights broadcast to tmpy's (p,c,w) lane layout, one 256-lane block per q
    wxt = jnp.broadcast_to(wx[:, :, None, None, :],
                           (R, POOL_W, POOL_H, C, W)).reshape(R, WXT_LANES)                 # (R,1024)

    # per-ROI decode operands, pre-broadcast to the class-major 12-lane layout
    x1, y1, x2, y2 = proposals[:, 0], proposals[:, 1], proposals[:, 2], proposals[:, 3]
    pw = x2 - x1
    ph = y2 - y1
    cx = x1 + 0.5 * pw
    cy = y1 + 0.5 * ph
    ctr4 = jnp.stack([cx, cy, cx, cy], axis=1)
    size4 = jnp.stack([pw, ph, pw, ph], axis=1)
    half4 = jnp.stack([-0.5 * pw, -0.5 * ph, 0.5 * pw, 0.5 * ph], axis=1)
    dec = jnp.concatenate([jnp.tile(ctr4, (1, CLASS_NUM)),
                           jnp.tile(size4, (1, CLASS_NUM)),
                           jnp.tile(half4, (1, CLASS_NUM))], axis=1)                        # (R,36)

    perroi = jnp.concatenate([wxt, wyb, dec], axis=1)                                       # (R,1188)

    # block-diagonal feature operand kron(I_P, feat[b*H+h, c*W+w]) -> one matmul does
    # selection + y-pool with p in the output lanes
    featT = features.transpose(0, 2, 1, 3)                                                  # (B,H,C,W)
    featblk = jnp.einsum('pk,bhcw->pbhkcw', jnp.eye(POOL_H, dtype=jnp.float32),
                         featT).reshape(POOL_H * B * H, PCW)                                # (128,256)

    slab = pl.pallas_call(
        roinet_kernel,
        out_shape=jax.ShapeDtypeStruct((R, OUT_LANES), jnp.float32),
    )(perroi, featblk, prep)

    # kernel rois lane order is (q,p,c); present as torch (R, C, pool_h, pool_w)
    rois = slab[:, O_ROIS:O_LOGIT].reshape(R, POOL_W, POOL_H, C).transpose(0, 3, 2, 1)
    label_pre = slab[:, O_LOGIT:O_DELTA]
    bbox_pre = slab[:, O_DELTA:O_SCORE]
    scores = slab[:, O_SCORE:O_BOX]
    boxes = slab[:, O_BOX:O_END].reshape(R, CLASS_NUM, 4)      # already class-major: reshape only

    # Fixed-shape masks standing in for score-thresholding / small-box removal.
    area = (boxes[..., 3] - boxes[..., 1]) * (boxes[..., 2] - boxes[..., 0])
    keep_mask = (scores > SCORE_THRE) & (area > 0.1)
    # TODO(synk): batched_nms + per-image variable-length top-k gather left out of the kernel path.
    return {"scores": scores, "boxes": boxes, "keep_mask": keep_mask,
            "label_pre": label_pre, "bbox_pre": bbox_pre, "rois": rois}


# ------------------------- plain-JAX reference (checking) --------------------
def roinet_reference(features, proposals, batch_idx, params):
    w1, b1, w2, b2, wc, bc, wb, bb = params
    wy = _interp_weights_1d(proposals[:, 1], proposals[:, 3], POOL_H, H, STRIDE, SAMPLING)
    wx = _interp_weights_1d(proposals[:, 0], proposals[:, 2], POOL_W, W, STRIDE, SAMPLING)
    fg = features[batch_idx]                                           # (R,C,H,W)
    pooled = jnp.einsum('rchw,rph,rqw->rcpq', fg, wy, wx)              # (R,C,P,Q)
    rois_flat = pooled.reshape(R, -1)
    h1 = jax.nn.relu(rois_flat @ w1 + b1)
    h2 = jax.nn.relu(h1 @ w2 + b2)
    logits = h2 @ wc + bc
    deltas = h2 @ wb + bb
    scores = jax.nn.softmax(logits, axis=-1)[:, 1:]
    bw = jnp.asarray(BOX_WEIGHT, jnp.float32)
    d = deltas[:, 4:].reshape(R, CLASS_NUM, 4) / bw
    x1, y1, x2, y2 = proposals[:, 0], proposals[:, 1], proposals[:, 2], proposals[:, 3]
    pw = x2 - x1
    ph = y2 - y1
    cx = x1 + 0.5 * pw
    cy = y1 + 0.5 * ph
    pcx = d[..., 0] * pw[:, None] + cx[:, None]
    pcy = d[..., 1] * ph[:, None] + cy[:, None]
    pbw = jnp.exp(d[..., 2]) * pw[:, None]
    pbh = jnp.exp(d[..., 3]) * ph[:, None]
    boxes = jnp.stack([pcx - 0.5 * pbw, pcy - 0.5 * pbh, pcx + 0.5 * pbw, pcy + 0.5 * pbh], axis=-1)
    return pooled, logits, deltas, scores, boxes


# ---------------------------------- main --------------------------------------
def make_params(key):
    ks = jax.random.split(key, 4)
    w1 = jax.random.normal(ks[0], (D_FLAT, HIDDEN), jnp.float32) * 0.2
    b1 = jnp.zeros((1, HIDDEN), jnp.float32)
    w2 = jax.random.normal(ks[1], (HIDDEN, HIDDEN), jnp.float32) * 0.3
    b2 = jnp.zeros((1, HIDDEN), jnp.float32)
    wc = jax.random.normal(ks[2], (HIDDEN, NUM_CLS), jnp.float32) * 0.3
    bc = jnp.zeros((1, NUM_CLS), jnp.float32)
    wb = jax.random.normal(ks[3], (HIDDEN, 4 * NUM_CLS), jnp.float32) * 0.3
    bb = jnp.zeros((1, 4 * NUM_CLS), jnp.float32)
    return (w1, b1, w2, b2, wc, bc, wb, bb)


if __name__ == "__main__":
    key = jax.random.PRNGKey(0)
    k_feat, k_box, k_wh, k_par = jax.random.split(key, 4)

    # features: NCHW, one FPN level; image size = STRIDE * H = 128
    features = jax.random.normal(k_feat, (B, C, H, W), jnp.float32)

    # proposals: R boxes (x1, y1, x2, y2) in image coords, R_PER_IM per image
    xy1 = jax.random.uniform(k_box, (R, 2), jnp.float32, 0.0, 96.0)
    wh = jax.random.uniform(k_wh, (R, 2), jnp.float32, 8.0, 30.0)
    proposals = jnp.concatenate([xy1, jnp.minimum(xy1 + wh, 127.0)], axis=1)
    batch_idx = jnp.repeat(jnp.arange(B, dtype=jnp.int32), R_PER_IM)

    params = make_params(k_par)
    prep = prepare_params(params)          # one-time parameter/constant packing

    out = roinet_forward(features, proposals, batch_idx, prep)
    jax.block_until_ready(out)

    # shape checks
    assert out["rois"].shape == (R, C, POOL_H, POOL_W)
    assert out["label_pre"].shape == (R, NUM_CLS)
    assert out["bbox_pre"].shape == (R, 4 * NUM_CLS)
    assert out["scores"].shape == (R, CLASS_NUM)
    assert out["boxes"].shape == (R, CLASS_NUM, 4)
    assert bool(jnp.all(jnp.isfinite(out["boxes"]))) and bool(jnp.all(jnp.isfinite(out["scores"])))

    # numerical check against a plain-JAX reference of the same forward
    ref_pooled, ref_logits, ref_deltas, ref_scores, ref_boxes = roinet_reference(
        features, proposals, batch_idx, params)
    np.testing.assert_allclose(np.asarray(out["rois"]), np.asarray(ref_pooled), rtol=0.1, atol=0.1)
    np.testing.assert_allclose(np.asarray(out["label_pre"]), np.asarray(ref_logits), rtol=0.1, atol=0.1)
    np.testing.assert_allclose(np.asarray(out["bbox_pre"]), np.asarray(ref_deltas), rtol=0.1, atol=0.1)
    np.testing.assert_allclose(np.asarray(out["scores"]), np.asarray(ref_scores), rtol=0.1, atol=0.05)
    np.testing.assert_allclose(np.asarray(out["boxes"]), np.asarray(ref_boxes), rtol=0.05, atol=0.5)

    # softmax sanity: probs (incl. background) sum to 1
    probs_sum = jnp.sum(jax.nn.softmax(out["label_pre"], axis=-1), axis=-1)
    assert bool(jnp.all(jnp.abs(probs_sum - 1.0) < 1e-5))
    print("KERNEL_OK")
</pallas_src>

<mosaic_0001>
module attributes {stable_mosaic.version = 11 : i64} {
  func.func @roinet_kernel(%arg0: memref<16x1188xf32, #tpu.memory_space<vmem>>, %arg1: memref<128x256xf32, #tpu.memory_space<vmem>>, %arg2: memref<392x44xf32, #tpu.memory_space<vmem>>, %arg3: memref<16x128xf32, #tpu.memory_space<vmem>>) attributes {dimension_semantics = [], scalar_prefetch = 0 : i64, scratch_operands = 0 : i64, tpu.core_type = #tpu.core_type<tc>} {
    %c0 = arith.constant 0 : index
    %c0_0 = arith.constant 0 : index
    %0 = vector.load %arg2[%c0, %c0_0] : memref<392x44xf32, #tpu.memory_space<vmem>>, vector<256x16xf32>
    %c256 = arith.constant 256 : index
    %c0_1 = arith.constant 0 : index
    %1 = vector.load %arg2[%c256, %c0_1] : memref<392x44xf32, #tpu.memory_space<vmem>>, vector<64x32xf32>
    %c320 = arith.constant 320 : index
    %c0_2 = arith.constant 0 : index
    %2 = vector.load %arg2[%c320, %c0_2] : memref<392x44xf32, #tpu.memory_space<vmem>>, vector<32x32xf32>
    %c352 = arith.constant 352 : index
    %c0_3 = arith.constant 0 : index
    %3 = vector.load %arg2[%c352, %c0_3] : memref<392x44xf32, #tpu.memory_space<vmem>>, vector<32x44xf32>
    %c384 = arith.constant 384 : index
    %c0_4 = arith.constant 0 : index
    %4 = vector.load %arg2[%c384, %c0_4] : memref<392x44xf32, #tpu.memory_space<vmem>>, vector<8x44xf32>
    %5 = vector.extract_strided_slice %4 {offsets = [0, 0], sizes = [1, 32], strides = [1, 1]} : vector<8x44xf32> to vector<1x32xf32>
    %6 = vector.extract_strided_slice %4 {offsets = [1, 0], sizes = [1, 32], strides = [1, 1]} : vector<8x44xf32> to vector<1x32xf32>
    %7 = vector.extract_strided_slice %4 {offsets = [2, 0], sizes = [1, 44], strides = [1, 1]} : vector<8x44xf32> to vector<1x44xf32>
    %c0_5 = arith.constant 0 : index
    %c1024 = arith.constant 1024 : index
    %8 = vector.load %arg0[%c0_5, %c1024] : memref<16x1188xf32, #tpu.memory_space<vmem>>, vector<16x128xf32>
    %c0_6 = arith.constant 0 : index
    %c0_7 = arith.constant 0 : index
    %9 = vector.load %arg1[%c0_6, %c0_7] : memref<128x256xf32, #tpu.memory_space<vmem>>, vector<128x256xf32>
    %cst = arith.constant dense<0.000000e+00> : vector<16x256xf32>
    %10 = tpu.matmul %8, %9, %cst {dimension_numbers = #tpu.dot_dimension_numbers<[1], [0], [0], [1], [0, 0, 1, 1], [], []>} : vector<16x128xf32>, vector<128x256xf32>, vector<16x256xf32> -> vector<16x256xf32>
    %c0_8 = arith.constant 0 : index
    %c0_9 = arith.constant 0 : index
    %11 = vector.load %arg0[%c0_8, %c0_9] : memref<16x1188xf32, #tpu.memory_space<vmem>>, vector<16x256xf32>
    %12 = arith.mulf %10, %11 : vector<16x256xf32>
    %cst_10 = arith.constant dense<0.000000e+00> : vector<16x16xf32>
    %13 = tpu.matmul %12, %0, %cst_10 {dimension_numbers = #tpu.dot_dimension_numbers<[1], [0], [0], [1], [0, 0, 1, 1], [], []>} : vector<16x256xf32>, vector<256x16xf32>, vector<16x16xf32> -> vector<16x16xf32>
    %c0_11 = arith.constant 0 : index
    %c256_12 = arith.constant 256 : index
    %14 = vector.load %arg0[%c0_11, %c256_12] : memref<16x1188xf32, #tpu.memory_space<vmem>>, vector<16x256xf32>
    %15 = arith.mulf %10, %14 : vector<16x256xf32>
    %cst_13 = arith.constant dense<0.000000e+00> : vector<16x16xf32>
    %16 = tpu.matmul %15, %0, %cst_13 {dimension_numbers = #tpu.dot_dimension_numbers<[1], [0], [0], [1], [0, 0, 1, 1], [], []>} : vector<16x256xf32>, vector<256x16xf32>, vector<16x16xf32> -> vector<16x16xf32>
    %c0_14 = arith.constant 0 : index
    %c512 = arith.constant 512 : index
    %17 = vector.load %arg0[%c0_14, %c512] : memref<16x1188xf32, #tpu.memory_space<vmem>>, vector<16x256xf32>
    %18 = arith.mulf %10, %17 : vector<16x256xf32>
    %cst_15 = arith.constant dense<0.000000e+00> : vector<16x16xf32>
    %19 = tpu.matmul %18, %0, %cst_15 {dimension_numbers = #tpu.dot_dimension_numbers<[1], [0], [0], [1], [0, 0, 1, 1], [], []>} : vector<16x256xf32>, vector<256x16xf32>, vector<16x16xf32> -> vector<16x16xf32>
    %c0_16 = arith.constant 0 : index
    %c768 = arith.constant 768 : index
    %20 = vector.load %arg0[%c0_16, %c768] : memref<16x1188xf32, #tpu.memory_space<vmem>>, vector<16x256xf32>
    %21 = arith.mulf %10, %20 : vector<16x256xf32>
    %cst_17 = arith.constant dense<0.000000e+00> : vector<16x16xf32>
    %22 = tpu.matmul %21, %0, %cst_17 {dimension_numbers = #tpu.dot_dimension_numbers<[1], [0], [0], [1], [0, 0, 1, 1], [], []>} : vector<16x256xf32>, vector<256x16xf32>, vector<16x16xf32> -> vector<16x16xf32>
    %23 = tpu.concatenate %13, %16, %19, %22 in 1 : vector<16x16xf32>, vector<16x16xf32>, vector<16x16xf32>, vector<16x16xf32> -> vector<16x64xf32>
    %cst_18 = arith.constant dense<0.000000e+00> : vector<16x32xf32>
    %24 = tpu.matmul %23, %1, %cst_18 {dimension_numbers = #tpu.dot_dimension_numbers<[1], [0], [0], [1], [0, 0, 1, 1], [], []>} : vector<16x64xf32>, vector<64x32xf32>, vector<16x32xf32> -> vector<16x32xf32>
    %25 = vector.broadcast %5 : vector<1x32xf32> to vector<16x32xf32>
    %26 = arith.addf %24, %25 : vector<16x32xf32>
    %cst_19 = arith.constant 0.000000e+00 : f32
    %27 = vector.broadcast %cst_19 : f32 to vector<16x32xf32>
    %28 = arith.maximumf %26, %27 : vector<16x32xf32>
    %cst_20 = arith.constant dense<0.000000e+00> : vector<16x32xf32>
    %29 = tpu.matmul %28, %2, %cst_20 {dimension_numbers = #tpu.dot_dimension_numbers<[1], [0], [0], [1], [0, 0, 1, 1], [], []>} : vector<16x32xf32>, vector<32x32xf32>, vector<16x32xf32> -> vector<16x32xf32>
    %30 = vector.broadcast %6 : vector<1x32xf32> to vector<16x32xf32>
    %31 = arith.addf %29, %30 : vector<16x32xf32>
    %cst_21 = arith.constant 0.000000e+00 : f32
    %32 = vector.broadcast %cst_21 : f32 to vector<16x32xf32>
    %33 = arith.maximumf %31, %32 : vector<16x32xf32>
    %cst_22 = arith.constant dense<0.000000e+00> : vector<16x44xf32>
    %34 = tpu.matmul %33, %3, %cst_22 {dimension_numbers = #tpu.dot_dimension_numbers<[1], [0], [0], [1], [0, 0, 1, 1], [], []>} : vector<16x32xf32>, vector<32x44xf32>, vector<16x44xf32> -> vector<16x44xf32>
    %35 = vector.broadcast %7 : vector<1x44xf32> to vector<16x44xf32>
    %36 = arith.addf %34, %35 : vector<16x44xf32>
    %37 = vector.extract_strided_slice %36 {offsets = [0, 0], sizes = [16, 4], strides = [1, 1]} : vector<16x44xf32> to vector<16x4xf32>
    %38 = vector.extract_strided_slice %36 {offsets = [0, 4], sizes = [16, 16], strides = [1, 1]} : vector<16x44xf32> to vector<16x16xf32>
    %39 = vector.extract_strided_slice %36 {offsets = [0, 20], sizes = [16, 12], strides = [1, 1]} : vector<16x44xf32> to vector<16x12xf32>
    %40 = vector.extract_strided_slice %36 {offsets = [0, 32], sizes = [16, 12], strides = [1, 1]} : vector<16x44xf32> to vector<16x12xf32>
    %cst_23 = arith.constant dense<0xFF800000> : vector<16xf32>
    %41 = vector.multi_reduction <maximumf>, %37, %cst_23 [1] : vector<16x4xf32> to vector<16xf32>
    %42 = vector.shape_cast %41 : vector<16xf32> to vector<16x1xf32>
    %43 = vector.broadcast %42 : vector<16x1xf32> to vector<16x4xf32>
    %44 = arith.subf %37, %43 : vector<16x4xf32>
    %45 = math.exp %44 : vector<16x4xf32>
    %cst_24 = arith.constant dense<0.000000e+00> : vector<16xf32>
    %46 = vector.multi_reduction <add>, %45, %cst_24 [1] : vector<16x4xf32> to vector<16xf32>
    %47 = vector.shape_cast %46 : vector<16xf32> to vector<16x1xf32>
    %48 = tpu.reciprocal %47 {approx = true} : vector<16x1xf32> -> vector<16x1xf32>
    %49 = vector.broadcast %48 : vector<16x1xf32> to vector<16x4xf32>
    %50 = arith.mulf %45, %49 : vector<16x4xf32>
    %51 = vector.extract_strided_slice %50 {offsets = [0, 1], sizes = [16, 3], strides = [1, 1]} : vector<16x4xf32> to vector<16x3xf32>
    %c0_25 = arith.constant 0 : index
    %c1152 = arith.constant 1152 : index
    %52 = vector.load %arg0[%c0_25, %c1152] : memref<16x1188xf32, #tpu.memory_space<vmem>>, vector<16x36xf32>
    %53 = vector.extract_strided_slice %52 {offsets = [0, 0], sizes = [16, 12], strides = [1, 1]} : vector<16x36xf32> to vector<16x12xf32>
    %54 = vector.extract_strided_slice %52 {offsets = [0, 12], sizes = [16, 12], strides = [1, 1]} : vector<16x36xf32> to vector<16x12xf32>
    %55 = vector.extract_strided_slice %52 {offsets = [0, 24], sizes = [16, 12], strides = [1, 1]} : vector<16x36xf32> to vector<16x12xf32>
    %56 = arith.mulf %39, %54 : vector<16x12xf32>
    %57 = arith.addf %53, %56 : vector<16x12xf32>
    %58 = math.exp %40 : vector<16x12xf32>
    %59 = arith.mulf %58, %55 : vector<16x12xf32>
    %60 = arith.addf %57, %59 : vector<16x12xf32>
    %cst_26 = arith.constant 0.000000e+00 : f32
    %61 = vector.broadcast %cst_26 : f32 to vector<16x29xf32>
    %62 = tpu.concatenate %23, %37, %38, %51, %60, %61 in 1 : vector<16x64xf32>, vector<16x4xf32>, vector<16x16xf32>, vector<16x3xf32>, vector<16x12xf32>, vector<16x29xf32> -> vector<16x128xf32>
    %c0_27 = arith.constant 0 : index
    %c0_28 = arith.constant 0 : index
    %63 = vector.load %arg3[%c0_27, %c0_28] : memref<16x128xf32, #tpu.memory_space<vmem>>, vector<16x128xf32>
    tpu.vector_store %arg3[%c0_27, %c0_28], %62 {strides = array<i32>} : memref<16x128xf32, #tpu.memory_space<vmem>>, vector<16x128xf32>,
    return
  }
}

</mosaic_0001>

<llo_original>
// kernel: tile.24
$region0: #{tile.24}
  %s0 = inlined_call_operand.vmem [shape: f32[16,3,4], index: 0, kind: input, shape index: {}]
  %s1 = inlined_call_operand.vmem [shape: f32[16,12], index: 1, kind: output, shape index: {}]
  $region1: #{tile.24} parent=0
    #allocation0 [shape = 'u8[12288]{0}', space=vmem, size = 0x3000, scoped, tag = 'scoped mem for input reshape']
    %s3 = sshllo.u32 0, 4
    %s4 = smul.addr 4, 2
    %s5 = scalar_lea.vmem %s0, %s4
    %v6 = vld [vmem:[%s5] sm:%s3]
    %s7 = scalar_lea.vmem [#allocation0], 16
    %8 = vst [vmem:[%s7] sm:%s3] %v6
    %s9 = scalar_lea.vmem %s0, 4
    %v10 = vld [vmem:[%s9] sm:%s3]
    %s11 = scalar_lea.vmem [#allocation0], 8
    %12 = vst [vmem:[%s11] sm:%s3] %v10
    %v13 = vld [vmem:[%s0] sm:%s3]
    %14 = vst [vmem:[#allocation0] sm:%s3] %v13
    %v15 = vld [vmem:[#allocation0] sm:$0xf]
    %vm16 = vcmask 130048
    %17 = vst.msk [vmem:[%s1] sm:$0xf] %vm16, %v15
    %s18 = scalar_lea.vmem [#allocation0], 8
    %v19 = vld [vmem:[%s18] sm:$0xf]
    %vm20 = vcmask 130048
    %s21 = scalar_lea.vmem %s1, 4
    %22 = vst.msk [vmem:[%s21] sm:$0xf] %vm20, %v19
    %s23 = scalar_lea.vmem [#allocation0], 16
    %v24 = vld [vmem:[%s23] sm:$0xf]
    %vm25 = vcmask 130048
    %s26 = scalar_lea.vmem %s1, 8
    %27 = vst.msk [vmem:[%s26] sm:$0xf] %vm25, %v24

// kernel: roinet_forward.1
$region0: #{roinet_forward.1}
  #allocation0 [shape = 'u32[]', space=smem, size = 0x4, offset = 0x4, fixed_abs, tag = 'smem constant byte address 0x4 - core index']
  #allocation1 [shape = 'u32[144,128]{1,0:T(1,128)}', space=vmem, size = 0x12000, scoped, tag = 'internal scratch']
  %s0 = inlined_call_operand.vmem [shape: f32[16,1188], index: 0, kind: input, shape index: {}]
  %s1 = inlined_call_operand.vmem [shape: f32[128,256], index: 1, kind: input, shape index: {}]
  %s2 = inlined_call_operand.vmem [shape: f32[392,44], index: 2, kind: input, shape index: {}]
  %s3 = inlined_call_operand.vmem [shape: f32[16,128], index: 3, kind: output, shape index: {}]
  %s4 = sld [smem:[#allocation0]]
  $region22: #{roinet_forward.1} parent=0
    _
  %s6 = ssub.s32 1, %s4
  %s7 = scalar_select 0, %s6, %s4
  // Predicated region
  $region2: #{roinet_forward.1} parent=0 // pred_check
    _
  $region3: #{roinet_forward.1} parent=0 // pred_check_branch
    %9 = sbr.rel (0) target = $region5
  $region4: #{roinet_forward.1} parent=0 // pred_region
    _
  $region5: #{roinet_forward.1} parent=0 // pred_fallthru
    _
  // Predicated region
  $region6: #{roinet_forward.1} parent=0 // pred_check
    _
  $region7: #{roinet_forward.1} parent=0 // pred_check_branch
    %11 = sbr.rel (0) target = $region9
  $region8: #{roinet_forward.1} parent=0 // pred_region
    _
  $region9: #{roinet_forward.1} parent=0 // pred_fallthru
    _
  // Predicated region
  $region10: #{roinet_forward.1} parent=0 // pred_check
    _
  $region11: #{roinet_forward.1} parent=0 // pred_check_branch
    %13 = sbr.rel (0) target = $region13
  $region12: #{roinet_forward.1} parent=0 // pred_region
    _
  $region13: #{roinet_forward.1} parent=0 // pred_fallthru
    _
  %v14 = vld [vmem:[%s2] sm:$0xff]
  %v15 = vld [vmem:[%s2 + $0x8] sm:$0xff]
  %v16 = vld [vmem:[%s2 + $0x10] sm:$0xff]
  %v17 = vld [vmem:[%s2 + $0x18] sm:$0xff]
  %v18 = vld [vmem:[%s2 + $0x20] sm:$0xff]
  %v19 = vld [vmem:[%s2 + $0x28] sm:$0xff]
  %v20 = vld [vmem:[%s2 + $0x30] sm:$0xff]
  %v21 = vld [vmem:[%s2 + $0x38] sm:$0xff]
  %v22 = vld [vmem:[%s2 + $0x40] sm:$0xff]
  %v23 = vld [vmem:[%s2 + $0x48] sm:$0xff]
  %v24 = vld [vmem:[%s2 + $0x50] sm:$0xff]
  %v25 = vld [vmem:[%s2 + $0x58] sm:$0xff]
  %v26 = vld [vmem:[%s2 + $0x60] sm:$0xff]
  %v27 = vld [vmem:[%s2 + $0x68] sm:$0xff]
  %v28 = vld [vmem:[%s2 + $0x70] sm:$0xff]
  %v29 = vld [vmem:[%s2 + $0x78] sm:$0xff]
  %v30 = vld [vmem:[%s2 + $0x80] sm:$0xff]
  %v31 = vld [vmem:[%s2 + $0x88] sm:$0xff]
  %v32 = vld [vmem:[%s2 + $0x90] sm:$0xff]
  %v33 = vld [vmem:[%s2 + $0x98] sm:$0xff]
  %v34 = vld [vmem:[%s2 + $0xa0] sm:$0xff]
  %v35 = vld [vmem:[%s2 + $0xa8] sm:$0xff]
  %v36 = vld [vmem:[%s2 + $0xb0] sm:$0xff]
  %v37 = vld [vmem:[%s2 + $0xb8] sm:$0xff]
  %v38 = vld [vmem:[%s2 + $0xc0] sm:$0xff]
  %v39 = vld [vmem:[%s2 + $0xc8] sm:$0xff]
  %v40 = vld [vmem:[%s2 + $0xd0] sm:$0xff]
  %v41 = vld [vmem:[%s2 + $0xd8] sm:$0xff]
  %v42 = vld [vmem:[%s2 + $0xe0] sm:$0xff]
  %v43 = vld [vmem:[%s2 + $0xe8] sm:$0xff]
  %v44 = vld [vmem:[%s2 + $0xf0] sm:$0xff]
  %v45 = vld [vmem:[%s2 + $0xf8] sm:$0xff]
  %v46 = vld [vmem:[%s2 + $0x100] sm:$0xff]
  %v47 = vld [vmem:[%s2 + $0x108] sm:$0xff]
  %v48 = vld [vmem:[%s2 + $0x110] sm:$0xff]
  %v49 = vld [vmem:[%s2 + $0x118] sm:$0xff]
  %v50 = vld [vmem:[%s2 + $0x120] sm:$0xff]
  %v51 = vld [vmem:[%s2 + $0x128] sm:$0xff]
  %v52 = vld [vmem:[%s2 + $0x130] sm:$0xff]
  %v53 = vld [vmem:[%s2 + $0x138] sm:$0xff]
  %v54 = vld [vmem:[%s2 + $0x140] sm:$0xff]
  %v55 = vld [vmem:[%s2 + $0x148] sm:$0xff]
  %v56 = vld [vmem:[%s2 + $0x150] sm:$0xff]
  %v57 = vld [vmem:[%s2 + $0x158] sm:$0xff]
  %v58 = vld [vmem:[%s2 + $0x160] sm:$0xff]
  %v59 = vld [vmem:[%s2 + $0x168] sm:$0xff]
  %v60 = vld [vmem:[%s2 + $0x170] sm:$0xff]
  %v61 = vld [vmem:[%s2 + $0x178] sm:$0xff]
  %v62 = vld [vmem:[%s2 + $0x180] sm:$0xff]
  %v63 = vld [vmem:[%s0 + $0x40] sm:$0xff]
  %v64 = vld [vmem:[%s0 + $0x90] sm:$0xff]
  %v65 = vld [vmem:[%s1] sm:$0xff]
  %v66 = vld [vmem:[%s1 + $0x8] sm:$0xff]
  %v67 = vld [vmem:[%s1 + $0x10] sm:$0xff]
  %v68 = vld [vmem:[%s1 + $0x18] sm:$0xff]
  %v69 = vld [vmem:[%s1 + $0x20] sm:$0xff]
  %v70 = vld [vmem:[%s1 + $0x28] sm:$0xff]
  %v71 = vld [vmem:[%s1 + $0x30] sm:$0xff]
  %v72 = vld [vmem:[%s1 + $0x38] sm:$0xff]
  %v73 = vld [vmem:[%s1 + $0x40] sm:$0xff]
  %v74 = vld [vmem:[%s1 + $0x48] sm:$0xff]
  %v75 = vld [vmem:[%s1 + $0x50] sm:$0xff]
  %v76 = vld [vmem:[%s1 + $0x58] sm:$0xff]
  %v77 = vld [vmem:[%s1 + $0x60] sm:$0xff]
  %v78 = vld [vmem:[%s1 + $0x68] sm:$0xff]
  %v79 = vld [vmem:[%s1 + $0x70] sm:$0xff]
  %v80 = vld [vmem:[%s1 + $0x78] sm:$0xff]
  %v81 = vld [vmem:[%s1 + $0x80] sm:$0xff]
  %v82 = vld [vmem:[%s1 + $0x88] sm:$0xff]
  %v83 = vld [vmem:[%s1 + $0x90] sm:$0xff]
  %v84 = vld [vmem:[%s1 + $0x98] sm:$0xff]
  %v85 = vld [vmem:[%s1 + $0xa0] sm:$0xff]
  %v86 = vld [vmem:[%s1 + $0xa8] sm:$0xff]
  %v87 = vld [vmem:[%s1 + $0xb0] sm:$0xff]
  %v88 = vld [vmem:[%s1 + $0xb8] sm:$0xff]
  %v89 = vld [vmem:[%s1 + $0xc0] sm:$0xff]
  %v90 = vld [vmem:[%s1 + $0xc8] sm:$0xff]
  %v91 = vld [vmem:[%s1 + $0xd0] sm:$0xff]
  %v92 = vld [vmem:[%s1 + $0xd8] sm:$0xff]
  %v93 = vld [vmem:[%s1 + $0xe0] sm:$0xff]
  %v94 = vld [vmem:[%s1 + $0xe8] sm:$0xff]
  %v95 = vld [vmem:[%s1 + $0xf0] sm:$0xff]
  %v96 = vld [vmem:[%s1 + $0xf8] sm:$0xff]
  %97 = vmatprep.subr.mxu0 %v66
  %98 = vmatpush1.msra.mxu0 %v65
  %99 = vmatprep.subr.mxu0 %v68
  %100 = vmatpush1.msra.mxu0 %v67
  %101 = vmatprep.subr.mxu0 %v70
  %102 = vmatpush1.msra.mxu0 %v69
  %103 = vmatprep.subr.mxu0 %v72
  %104 = vmatpush1.msra.mxu0 %v71
  %105 = vmatprep.subr.mxu0 %v74
  %106 = vmatpush1.msra.mxu0 %v73
  %107 = vmatprep.subr.mxu0 %v76
  %108 = vmatpush1.msra.mxu0 %v75
  %109 = vmatprep.subr.mxu0 %v78
  %110 = vmatpush1.msra.mxu0 %v77
  %111 = vmatprep.subr.mxu0 %v80
  %112 = vmatpush1.msra.mxu0 %v79
  %113 = vmatprep.subr.mxu0 %v82
  %114 = vmatpush1.msra.mxu0 %v81
  %115 = vmatprep.subr.mxu0 %v84
  %116 = vmatpush1.msra.mxu0 %v83
  %117 = vmatprep.subr.mxu0 %v86
  %118 = vmatpush1.msra.mxu0 %v85
  %119 = vmatprep.subr.mxu0 %v88
  %120 = vmatpush1.msra.mxu0 %v87
  %121 = vmatprep.subr.mxu0 %v90
  %122 = vmatpush1.msra.mxu0 %v89
  %123 = vmatprep.subr.mxu0 %v92
  %124 = vmatpush1.msra.mxu0 %v91
  %125 = vmatprep.subr.mxu0 %v94
  %126 = vmatpush1.msra.mxu0 %v93
  %127 = vmatprep.subr.mxu0 %v96
  %128 = vmatpush1.msra.mxu0 %v95
  %129 = vmatprep.subr.mxu0 0.0
  %130 = vmatpush1.msra.mxu0 0.0
  %131 = vmatprep.subr.mxu0 0.0
  %132 = vmatpush1.msra.mxu0 0.0
  %133 = vmatprep.subr.mxu0 0.0
  %134 = vmatpush1.msra.mxu0 0.0
  %135 = vmatprep.subr.mxu0 0.0
  %136 = vmatpush1.msra.mxu0 0.0
  %137 = vmatprep.subr.mxu0 0.0
  %138 = vmatpush1.msra.mxu0 0.0
  %139 = vmatprep.subr.mxu0 0.0
  %140 = vmatpush1.msra.mxu0 0.0
  %141 = vmatprep.subr.mxu0 0.0
  %142 = vmatpush1.msra.mxu0 0.0
  %143 = vmatprep.subr.mxu0 0.0
  %144 = vmatpush1.msra.mxu0 0.0
  %145 = vmatprep.subr.mxu0 0.0
  %146 = vmatpush1.msra.mxu0 0.0
  %147 = vmatprep.subr.mxu0 0.0
  %148 = vmatpush1.msra.mxu0 0.0
  %149 = vmatprep.subr.mxu0 0.0
  %150 = vmatpush1.msra.mxu0 0.0
  %151 = vmatprep.subr.mxu0 0.0
  %152 = vmatpush1.msra.mxu0 0.0
  %153 = vmatprep.subr.mxu0 0.0
  %154 = vmatpush1.msra.mxu0 0.0
  %155 = vmatprep.subr.mxu0 0.0
  %156 = vmatpush1.msra.mxu0 0.0
  %157 = vmatprep.subr.mxu0 0.0
  %158 = vmatpush1.msra.mxu0 0.0
  %159 = vmatprep.subr.mxu0 0.0
  %160 = vmatpush1.msra.mxu0 0.0
  %161 = vmatprep.mubr.f32.mxu0 0.0
  %162 = vmatmul.mubr.f32.gmra.mrb[0].mxu0 %v63
  %v163 = vpop.f32.mrb[0].mxu0
  %v164 = vadd.f32 0.0, %v163
  %v165 = vpop.f32.mrb[0].mxu0
  %v166 = vadd.f32 0.0, %v165
  %167 = vmatprep.mubr.f32.mxu0 0.0
  %168 = vmatmul.mubr.f32.gmra.mrb[0].mxu0 %v64
  %v169 = vpop.f32.mrb[0].mxu0
  %v170 = vadd.f32 0.0, %v169
  %v171 = vpop.f32.mrb[0].mxu0
  %v172 = vadd.f32 0.0, %v171
  %173 = vdwg.mxu0
  %v174 = vld [vmem:[%s0] sm:$0xff]
  %v175 = vld [vmem:[%s0 + $0x8] sm:$0xff]
  %v176 = vld [vmem:[%s0 + $0x50] sm:$0xff]
  %v177 = vld [vmem:[%s0 + $0x58] sm:$0xff]
  %v178 = vmul.f32 %v164, %v174
  %v179 = vmul.f32 %v166, %v175
  %v180 = vmul.f32 %v170, %v176
  %v181 = vmul.f32 %v172, %v177
  %182 = vmatprep.subr.mxu0 0.0
  %183 = vmatpush1.msra.mxu0 %v14
  %184 = vmatprep.subr.mxu0 0.0
  %185 = vmatpush1.msra.mxu0 %v15
  %186 = vmatprep.subr.mxu0 0.0
  %187 = vmatpush1.msra.mxu0 %v16
  %188 = vmatprep.subr.mxu0 0.0
  %189 = vmatpush1.msra.mxu0 %v17
  %190 = vmatprep.subr.mxu0 0.0
  %191 = vmatpush1.msra.mxu0 %v18
  %192 = vmatprep.subr.mxu0 0.0
  %193 = vmatpush1.msra.mxu0 %v19
  %194 = vmatprep.subr.mxu0 0.0
  %195 = vmatpush1.msra.mxu0 %v20
  %196 = vmatprep.subr.mxu0 0.0
  %197 = vmatpush1.msra.mxu0 %v21
  %198 = vmatprep.subr.mxu0 0.0
  %199 = vmatpush1.msra.mxu0 %v22
  %200 = vmatprep.subr.mxu0 0.0
  %201 = vmatpush1.msra.mxu0 %v23
  %202 = vmatprep.subr.mxu0 0.0
  %203 = vmatpush1.msra.mxu0 %v24
  %204 = vmatprep.subr.mxu0 0.0
  %205 = vmatpush1.msra.mxu0 %v25
  %206 = vmatprep.subr.mxu0 0.0
  %207 = vmatpush1.msra.mxu0 %v26
  %208 = vmatprep.subr.mxu0 0.0
  %209 = vmatpush1.msra.mxu0 %v27
  %210 = vmatprep.subr.mxu0 0.0
  %211 = vmatpush1.msra.mxu0 %v28
  %212 = vmatprep.subr.mxu0 0.0
  %213 = vmatpush1.msra.mxu0 %v29
  %214 = vmatprep.subr.mxu0 0.0
  %215 = vmatpush1.msra.mxu0 %v30
  %216 = vmatprep.subr.mxu0 0.0
  %217 = vmatpush1.msra.mxu0 %v31
  %218 = vmatprep.subr.mxu0 0.0
  %219 = vmatpush1.msra.mxu0 %v32
  %220 = vmatprep.subr.mxu0 0.0
  %221 = vmatpush1.msra.mxu0 %v33
  %222 = vmatprep.subr.mxu0 0.0
  %223 = vmatpush1.msra.mxu0 %v34
  %224 = vmatprep.subr.mxu0 0.0
  %225 = vmatpush1.msra.mxu0 %v35
  %226 = vmatprep.subr.mxu0 0.0
  %227 = vmatpush1.msra.mxu0 %v36
  %228 = vmatprep.subr.mxu0 0.0
  %229 = vmatpush1.msra.mxu0 %v37
  %230 = vmatprep.subr.mxu0 0.0
  %231 = vmatpush1.msra.mxu0 %v38
  %232 = vmatprep.subr.mxu0 0.0
  %233 = vmatpush1.msra.mxu0 %v39
  %234 = vmatprep.subr.mxu0 0.0
  %235 = vmatpush1.msra.mxu0 %v40
  %236 = vmatprep.subr.mxu0 0.0
  %237 = vmatpush1.msra.mxu0 %v41
  %238 = vmatprep.subr.mxu0 0.0
  %239 = vmatpush1.msra.mxu0 %v42
  %240 = vmatprep.subr.mxu0 0.0
  %241 = vmatpush1.msra.mxu0 %v43
  %242 = vmatprep.subr.mxu0 0.0
  %243 = vmatpush1.msra.mxu0 %v44
  %244 = vmatprep.subr.mxu0 0.0
  %245 = vmatpush1.msra.mxu0 %v45
  %246 = vmatprep.mubr.f32.mxu0 %v179
  %247 = vmatmul.mubr.f32.gmra.mrb[0].mxu0 %v178
  %v248 = vpop.f32.mrb[0].mxu0
  %v249 = vadd.f32 0.0, %v248
  %v250 = vpop.f32.mrb[0].mxu0
  %251 = vmatprep.mubr.f32.mxu0 %v181
  %252 = vmatmul.mubr.f32.gmra.mrb[0].mxu0 %v180
  %v253 = vpop.f32.mrb[0].mxu0
  %v254 = vadd.f32 0.0, %v253
  %v255 = vpop.f32.mrb[0].mxu0
  %256 = vdwg.mxu0
  %v257 = vld [vmem:[%s0 + $0x10] sm:$0xff]
  %v258 = vld [vmem:[%s0 + $0x18] sm:$0xff]
  %v259 = vld [vmem:[%s0 + $0x60] sm:$0xff]
  %v260 = vld [vmem:[%s0 + $0x68] sm:$0xff]
  %v261 = vmul.f32 %v164, %v257
  %v262 = vmul.f32 %v166, %v258
  %v263 = vmul.f32 %v170, %v259
  %v264 = vmul.f32 %v172, %v260
  %265 = vmatprep.subr.mxu0 0.0
  %266 = vmatpush1.msra.mxu0 %v14
  %267 = vmatprep.subr.mxu0 0.0
  %268 = vmatpush1.msra.mxu0 %v15
  %269 = vmatprep.subr.mxu0 0.0
  %270 = vmatpush1.msra.mxu0 %v16
  %271 = vmatprep.subr.mxu0 0.0
  %272 = vmatpush1.msra.mxu0 %v17
  %273 = vmatprep.subr.mxu0 0.0
  %274 = vmatpush1.msra.mxu0 %v18
  %275 = vmatprep.subr.mxu0 0.0
  %276 = vmatpush1.msra.mxu0 %v19
  %277 = vmatprep.subr.mxu0 0.0
  %278 = vmatpush1.msra.mxu0 %v20
  %279 = vmatprep.subr.mxu0 0.0
  %280 = vmatpush1.msra.mxu0 %v21
  %281 = vmatprep.subr.mxu0 0.0
  %282 = vmatpush1.msra.mxu0 %v22
  %283 = vmatprep.subr.mxu0 0.0
  %284 = vmatpush1.msra.mxu0 %v23
  %285 = vmatprep.subr.mxu0 0.0
  %286 = vmatpush1.msra.mxu0 %v24
  %287 = vmatprep.subr.mxu0 0.0
  %288 = vmatpush1.msra.mxu0 %v25
  %289 = vmatprep.subr.mxu0 0.0
  %290 = vmatpush1.msra.mxu0 %v26
  %291 = vmatprep.subr.mxu0 0.0
  %292 = vmatpush1.msra.mxu0 %v27
  %293 = vmatprep.subr.mxu0 0.0
  %294 = vmatpush1.msra.mxu0 %v28
  %295 = vmatprep.subr.mxu0 0.0
  %296 = vmatpush1.msra.mxu0 %v29
  %297 = vmatprep.subr.mxu0 0.0
  %298 = vmatpush1.msra.mxu0 %v30
  %299 = vmatprep.subr.mxu0 0.0
  %300 = vmatpush1.msra.mxu0 %v31
  %301 = vmatprep.subr.mxu0 0.0
  %302 = vmatpush1.msra.mxu0 %v32
  %303 = vmatprep.subr.mxu0 0.0
  %304 = vmatpush1.msra.mxu0 %v33
  %305 = vmatprep.subr.mxu0 0.0
  %306 = vmatpush1.msra.mxu0 %v34
  %307 = vmatprep.subr.mxu0 0.0
  %308 = vmatpush1.msra.mxu0 %v35
  %309 = vmatprep.subr.mxu0 0.0
  %310 = vmatpush1.msra.mxu0 %v36
  %311 = vmatprep.subr.mxu0 0.0
  %312 = vmatpush1.msra.mxu0 %v37
  %313 = vmatprep.subr.mxu0 0.0
  %314 = vmatpush1.msra.mxu0 %v38
  %315 = vmatprep.subr.mxu0 0.0
  %316 = vmatpush1.msra.mxu0 %v39
  %317 = vmatprep.subr.mxu0 0.0
  %318 = vmatpush1.msra.mxu0 %v40
  %319 = vmatprep.subr.mxu0 0.0
  %320 = vmatpush1.msra.mxu0 %v41
  %321 = vmatprep.subr.mxu0 0.0
  %322 = vmatpush1.msra.mxu0 %v42
  %323 = vmatprep.subr.mxu0 0.0
  %324 = vmatpush1.msra.mxu0 %v43
  %325 = vmatprep.subr.mxu0 0.0
  %326 = vmatpush1.msra.mxu0 %v44
  %327 = vmatprep.subr.mxu0 0.0
  %328 = vmatpush1.msra.mxu0 %v45
  %329 = vmatprep.mubr.f32.mxu0 %v262
  %330 = vmatmul.mubr.f32.gmra.mrb[0].mxu0 %v261
  %v331 = vpop.f32.mrb[0].mxu0
  %v332 = vadd.f32 0.0, %v331
  %v333 = vpop.f32.mrb[0].mxu0
  %334 = vmatprep.mubr.f32.mxu0 %v264
  %335 = vmatmul.mubr.f32.gmra.mrb[0].mxu0 %v263
  %v336 = vpop.f32.mrb[0].mxu0
  %v337 = vadd.f32 0.0, %v336
  %v338 = vpop.f32.mrb[0].mxu0
  %339 = vdwg.mxu0
  %v340 = vld [vmem:[%s0 + $0x20] sm:$0xff]
  %v341 = vld [vmem:[%s0 + $0x28] sm:$0xff]
  %v342 = vld [vmem:[%s0 + $0x70] sm:$0xff]
  %v343 = vld [vmem:[%s0 + $0x78] sm:$0xff]
  %v344 = vmul.f32 %v164, %v340
  %v345 = vmul.f32 %v166, %v341
  %v346 = vmul.f32 %v170, %v342
  %v347 = vmul.f32 %v172, %v343
  %348 = vmatprep.subr.mxu0 0.0
  %349 = vmatpush1.msra.mxu0 %v14
  %350 = vmatprep.subr.mxu0 0.0
  %351 = vmatpush1.msra.mxu0 %v15
  %352 = vmatprep.subr.mxu0 0.0
  %353 = vmatpush1.msra.mxu0 %v16
  %354 = vmatprep.subr.mxu0 0.0
  %355 = vmatpush1.msra.mxu0 %v17
  %356 = vmatprep.subr.mxu0 0.0
  %357 = vmatpush1.msra.mxu0 %v18
  %358 = vmatprep.subr.mxu0 0.0
  %359 = vmatpush1.msra.mxu0 %v19
  %360 = vmatprep.subr.mxu0 0.0
  %361 = vmatpush1.msra.mxu0 %v20
  %362 = vmatprep.subr.mxu0 0.0
  %363 = vmatpush1.msra.mxu0 %v21
  %364 = vmatprep.subr.mxu0 0.0
  %365 = vmatpush1.msra.mxu0 %v22
  %366 = vmatprep.subr.mxu0 0.0
  %367 = vmatpush1.msra.mxu0 %v23
  %368 = vmatprep.subr.mxu0 0.0
  %369 = vmatpush1.msra.mxu0 %v24
  %370 = vmatprep.subr.mxu0 0.0
  %371 = vmatpush1.msra.mxu0 %v25
  %372 = vmatprep.subr.mxu0 0.0
  %373 = vmatpush1.msra.mxu0 %v26
  %374 = vmatprep.subr.mxu0 0.0
  %375 = vmatpush1.msra.mxu0 %v27
  %376 = vmatprep.subr.mxu0 0.0
  %377 = vmatpush1.msra.mxu0 %v28
  %378 = vmatprep.subr.mxu0 0.0
  %379 = vmatpush1.msra.mxu0 %v29
  %380 = vmatprep.subr.mxu0 0.0
  %381 = vmatpush1.msra.mxu0 %v30
  %382 = vmatprep.subr.mxu0 0.0
  %383 = vmatpush1.msra.mxu0 %v31
  %384 = vmatprep.subr.mxu0 0.0
  %385 = vmatpush1.msra.mxu0 %v32
  %386 = vmatprep.subr.mxu0 0.0
  %387 = vmatpush1.msra.mxu0 %v33
  %388 = vmatprep.subr.mxu0 0.0
  %389 = vmatpush1.msra.mxu0 %v34
  %390 = vmatprep.subr.mxu0 0.0
  %391 = vmatpush1.msra.mxu0 %v35
  %392 = vmatprep.subr.mxu0 0.0
  %393 = vmatpush1.msra.mxu0 %v36
  %394 = vmatprep.subr.mxu0 0.0
  %395 = vmatpush1.msra.mxu0 %v37
  %396 = vmatprep.subr.mxu0 0.0
  %397 = vmatpush1.msra.mxu0 %v38
  %398 = vmatprep.subr.mxu0 0.0
  %399 = vmatpush1.msra.mxu0 %v39
  %400 = vmatprep.subr.mxu0 0.0
  %401 = vmatpush1.msra.mxu0 %v40
  %402 = vmatprep.subr.mxu0 0.0
  %403 = vmatpush1.msra.mxu0 %v41
  %404 = vmatprep.subr.mxu0 0.0
  %405 = vmatpush1.msra.mxu0 %v42
  %406 = vmatprep.subr.mxu0 0.0
  %407 = vmatpush1.msra.mxu0 %v43
  %408 = vmatprep.subr.mxu0 0.0
  %409 = vmatpush1.msra.mxu0 %v44
  %410 = vmatprep.subr.mxu0 0.0
  %411 = vmatpush1.msra.mxu0 %v45
  %412 = vmatprep.mubr.f32.mxu0 %v345
  %413 = vmatmul.mubr.f32.gmra.mrb[0].mxu0 %v344
  %v414 = vpop.f32.mrb[0].mxu0
  %v415 = vadd.f32 0.0, %v414
  %v416 = vpop.f32.mrb[0].mxu0
  %417 = vmatprep.mubr.f32.mxu0 %v347
  %418 = vmatmul.mubr.f32.gmra.mrb[0].mxu0 %v346
  %v419 = vpop.f32.mrb[0].mxu0
  %v420 = vadd.f32 0.0, %v419
  %v421 = vpop.f32.mrb[0].mxu0
  %422 = vdwg.mxu0
  %v423 = vld [vmem:[%s0 + $0x30] sm:$0xff]
  %v424 = vld [vmem:[%s0 + $0x38] sm:$0xff]
  %v425 = vld [vmem:[%s0 + $0x80] sm:$0xff]
  %v426 = vld [vmem:[%s0 + $0x88] sm:$0xff]
  %v427 = vmul.f32 %v164, %v423
  %v428 = vmul.f32 %v166, %v424
  %v429 = vmul.f32 %v170, %v425
  %v430 = vmul.f32 %v172, %v426
  %431 = vmatprep.subr.mxu0 0.0
  %432 = vmatpush1.msra.mxu0 %v14
  %433 = vmatprep.subr.mxu0 0.0
  %434 = vmatpush1.msra.mxu0 %v15
  %435 = vmatprep.subr.mxu0 0.0
  %436 = vmatpush1.msra.mxu0 %v16
  %437 = vmatprep.subr.mxu0 0.0
  %438 = vmatpush1.msra.mxu0 %v17
  %439 = vmatprep.subr.mxu0 0.0
  %440 = vmatpush1.msra.mxu0 %v18
  %441 = vmatprep.subr.mxu0 0.0
  %442 = vmatpush1.msra.mxu0 %v19
  %443 = vmatprep.subr.mxu0 0.0
  %444 = vmatpush1.msra.mxu0 %v20
  %445 = vmatprep.subr.mxu0 0.0
  %446 = vmatpush1.msra.mxu0 %v21
  %447 = vmatprep.subr.mxu0 0.0
  %448 = vmatpush1.msra.mxu0 %v22
  %449 = vmatprep.subr.mxu0 0.0
  %450 = vmatpush1.msra.mxu0 %v23
  %451 = vmatprep.subr.mxu0 0.0
  %452 = vmatpush1.msra.mxu0 %v24
  %453 = vmatprep.subr.mxu0 0.0
  %454 = vmatpush1.msra.mxu0 %v25
  %455 = vmatprep.subr.mxu0 0.0
  %456 = vmatpush1.msra.mxu0 %v26
  %457 = vmatprep.subr.mxu0 0.0
  %458 = vmatpush1.msra.mxu0 %v27
  %459 = vmatprep.subr.mxu0 0.0
  %460 = vmatpush1.msra.mxu0 %v28
  %461 = vmatprep.subr.mxu0 0.0
  %462 = vmatpush1.msra.mxu0 %v29
  %463 = vmatprep.subr.mxu0 0.0
  %464 = vmatpush1.msra.mxu0 %v30
  %465 = vmatprep.subr.mxu0 0.0
  %466 = vmatpush1.msra.mxu0 %v31
  %467 = vmatprep.subr.mxu0 0.0
  %468 = vmatpush1.msra.mxu0 %v32
  %469 = vmatprep.subr.mxu0 0.0
  %470 = vmatpush1.msra.mxu0 %v33
  %471 = vmatprep.subr.mxu0 0.0
  %472 = vmatpush1.msra.mxu0 %v34
  %473 = vmatprep.subr.mxu0 0.0
  %474 = vmatpush1.msra.mxu0 %v35
  %475 = vmatprep.subr.mxu0 0.0
  %476 = vmatpush1.msra.mxu0 %v36
  %477 = vmatprep.subr.mxu0 0.0
  %478 = vmatpush1.msra.mxu0 %v37
  %479 = vmatprep.subr.mxu0 0.0
  %480 = vmatpush1.msra.mxu0 %v38
  %481 = vmatprep.subr.mxu0 0.0
  %482 = vmatpush1.msra.mxu0 %v39
  %483 = vmatprep.subr.mxu0 0.0
  %484 = vmatpush1.msra.mxu0 %v40
  %485 = vmatprep.subr.mxu0 0.0
  %486 = vmatpush1.msra.mxu0 %v41
  %487 = vmatprep.subr.mxu0 0.0
  %488 = vmatpush1.msra.mxu0 %v42
  %489 = vmatprep.subr.mxu0 0.0
  %490 = vmatpush1.msra.mxu0 %v43
  %491 = vmatprep.subr.mxu0 0.0
  %492 = vmatpush1.msra.mxu0 %v44
  %493 = vmatprep.subr.mxu0 0.0
  %494 = vmatpush1.msra.mxu0 %v45
  %495 = vmatprep.mubr.f32.mxu0 %v428
  %496 = vmatmul.mubr.f32.gmra.mrb[0].mxu0 %v427
  %v497 = vpop.f32.mrb[0].mxu0
  %v498 = vadd.f32 0.0, %v497
  %v499 = vpop.f32.mrb[0].mxu0
  %500 = vmatprep.mubr.f32.mxu0 %v430
  %501 = vmatmul.mubr.f32.gmra.mrb[0].mxu0 %v429
  %v502 = vpop.f32.mrb[0].mxu0
  %v503 = vadd.f32 0.0, %v502
  %v504 = vpop.f32.mrb[0].mxu0
  %505 = vdwg.mxu0
  %508 = vrot.lane.b32.xlu0 %v332, 16
  %v509 = vpop.permute.xlu0 %508
  %510 = vrot.lane.b32.xlu0 %v337, 16
  %v511 = vpop.permute.xlu0 %510
  %516 = vrot.lane.b32.xlu0 %v415, 32
  %v517 = vpop.permute.xlu0 %516
  %518 = vrot.lane.b32.xlu0 %v420, 32
  %v519 = vpop.permute.xlu0 %518
  %524 = vrot.lane.b32.xlu0 %v498, 48
  %v525 = vpop.permute.xlu0 %524
  %526 = vrot.lane.b32.xlu0 %v503, 48
  %v527 = vpop.permute.xlu0 %526
  %vm530 = vcmask 130048
  %v531 = vsel %vm530, %v249, %v509
  %v532 = vsel %vm530, %v254, %v511
  %vm533 = vcmask 261120
  %v534 = vsel %vm533, %v531, %v517
  %v535 = vsel %vm533, %v532, %v519
  %vm536 = vcmask 392192
  %v537 = vsel %vm536, %v534, %v525
  %v538 = vsel %vm536, %v535, %v527
  %v539 = vlaneseq
  %v540 = vshrl.u32 %v539, 7
  %v541 = vsub.s32 0, %v540
  %v542 = vrot.slane %v62, %v541
  %vm543 = vcmask 523264
  %v545 = vsel %vm543, %v537, 0
  %v548 = vsel %vm543, %v538, 0
  %550 = vmatprep.subr.mxu0 0.0
  %551 = vmatpush1.msra.mxu0 %v46
  %552 = vmatprep.subr.mxu0 0.0
  %553 = vmatpush1.msra.mxu0 %v47
  %554 = vmatprep.subr.mxu0 0.0
  %555 = vmatpush1.msra.mxu0 %v48
  %556 = vmatprep.subr.mxu0 0.0
  %557 = vmatpush1.msra.mxu0 %v49
  %558 = vmatprep.subr.mxu0 0.0
  %559 = vmatpush1.msra.mxu0 %v50
  %560 = vmatprep.subr.mxu0 0.0
  %561 = vmatpush1.msra.mxu0 %v51
  %562 = vmatprep.subr.mxu0 0.0
  %563 = vmatpush1.msra.mxu0 %v52
  %564 = vmatprep.subr.mxu0 0.0
  %565 = vmatpush1.msra.mxu0 %v53
  %566 = vmatprep.subr.mxu0 0.0
  %567 = vmatpush1.msra.mxu0 0.0
  %568 = vmatprep.subr.mxu0 0.0
  %569 = vmatpush1.msra.mxu0 0.0
  %570 = vmatprep.subr.mxu0 0.0
  %571 = vmatpush1.msra.mxu0 0.0
  %572 = vmatprep.subr.mxu0 0.0
  %573 = vmatpush1.msra.mxu0 0.0
  %574 = vmatprep.subr.mxu0 0.0
  %575 = vmatpush1.msra.mxu0 0.0
  %576 = vmatprep.subr.mxu0 0.0
  %577 = vmatpush1.msra.mxu0 0.0
  %578 = vmatprep.subr.mxu0 0.0
  %579 = vmatpush1.msra.mxu0 0.0
  %580 = vmatprep.subr.mxu0 0.0
  %581 = vmatpush1.msra.mxu0 0.0
  %582 = vmatprep.subr.mxu0 0.0
  %583 = vmatpush1.msra.mxu0 0.0
  %584 = vmatprep.subr.mxu0 0.0
  %585 = vmatpush1.msra.mxu0 0.0
  %586 = vmatprep.subr.mxu0 0.0
  %587 = vmatpush1.msra.mxu0 0.0
  %588 = vmatprep.subr.mxu0 0.0
  %589 = vmatpush1.msra.mxu0 0.0
  %590 = vmatprep.subr.mxu0 0.0
  %591 = vmatpush1.msra.mxu0 0.0
  %592 = vmatprep.subr.mxu0 0.0
  %593 = vmatpush1.msra.mxu0 0.0
  %594 = vmatprep.subr.mxu0 0.0
  %595 = vmatpush1.msra.mxu0 0.0
  %596 = vmatprep.subr.mxu0 0.0
  %597 = vmatpush1.msra.mxu0 0.0
  %598 = vmatprep.subr.mxu0 0.0
  %599 = vmatpush1.msra.mxu0 0.0
  %600 = vmatprep.subr.mxu0 0.0
  %601 = vmatpush1.msra.mxu0 0.0
  %602 = vmatprep.subr.mxu0 0.0
  %603 = vmatpush1.msra.mxu0 0.0
  %604 = vmatprep.subr.mxu0 0.0
  %605 = vmatpush1.msra.mxu0 0.0
  %606 = vmatprep.subr.mxu0 0.0
  %607 = vmatpush1.msra.mxu0 0.0
  %608 = vmatprep.subr.mxu0 0.0
  %609 = vmatpush1.msra.mxu0 0.0
  %610 = vmatprep.subr.mxu0 0.0
  %611 = vmatpush1.msra.mxu0 0.0
  %612 = vmatprep.subr.mxu0 0.0
  %613 = vmatpush1.msra.mxu0 0.0
  %614 = vmatprep.mubr.f32.mxu0 0.0
  %615 = vmatmul.mubr.f32.gmra.mrb[0].mxu0 %v545
  %v616 = vpop.f32.mrb[0].mxu0
  %v617 = vadd.f32 %v542, %v616
  %v618 = vpop.f32.mrb[0].mxu0
  %619 = vmatprep.mubr.f32.mxu0 0.0
  %620 = vmatmul.mubr.f32.gmra.mrb[0].mxu0 %v548
  %v621 = vpop.f32.mrb[0].mxu0
  %v622 = vadd.f32 %v542, %v621
  %v623 = vpop.f32.mrb[0].mxu0
  %624 = vdwg.mxu0
  %v625 = vmax.f32 %v617, 0.0
  %v626 = vmax.f32 %v622, 0.0
  %v627 = vlaneseq
  %v628 = vshrl.u32 %v627, 7
  %v629 = vsub.s32 1, %v628
  %v630 = vrot.slane %v62, %v629
  %v632 = vsel %vm533, %v625, 0
  %v635 = vsel %vm533, %v626, 0
  %637 = vmatprep.subr.mxu0 0.0
  %638 = vmatpush1.msra.mxu0 %v54
  %639 = vmatprep.subr.mxu0 0.0
  %640 = vmatpush1.msra.mxu0 %v55
  %641 = vmatprep.subr.mxu0 0.0
  %642 = vmatpush1.msra.mxu0 %v56
  %643 = vmatprep.subr.mxu0 0.0
  %644 = vmatpush1.msra.mxu0 %v57
  %645 = vmatprep.subr.mxu0 0.0
  %646 = vmatpush1.msra.mxu0 0.0
  %647 = vmatprep.subr.mxu0 0.0
  %648 = vmatpush1.msra.mxu0 0.0
  %649 = vmatprep.subr.mxu0 0.0
  %650 = vmatpush1.msra.mxu0 0.0
  %651 = vmatprep.subr.mxu0 0.0
  %652 = vmatpush1.msra.mxu0 0.0
  %653 = vmatprep.subr.mxu0 0.0
  %654 = vmatpush1.msra.mxu0 0.0
  %655 = vmatprep.subr.mxu0 0.0
  %656 = vmatpush1.msra.mxu0 0.0
  %657 = vmatprep.subr.mxu0 0.0
  %658 = vmatpush1.msra.mxu0 0.0
  %659 = vmatprep.subr.mxu0 0.0
  %660 = vmatpush1.msra.mxu0 0.0
  %661 = vmatprep.subr.mxu0 0.0
  %662 = vmatpush1.msra.mxu0 0.0
  %663 = vmatprep.subr.mxu0 0.0
  %664 = vmatpush1.msra.mxu0 0.0
  %665 = vmatprep.subr.mxu0 0.0
  %666 = vmatpush1.msra.mxu0 0.0
  %667 = vmatprep.subr.mxu0 0.0
  %668 = vmatpush1.msra.mxu0 0.0
  %669 = vmatprep.subr.mxu0 0.0
  %670 = vmatpush1.msra.mxu0 0.0
  %671 = vmatprep.subr.mxu0 0.0
  %672 = vmatpush1.msra.mxu0 0.0
  %673 = vmatprep.subr.mxu0 0.0
  %674 = vmatpush1.msra.mxu0 0.0
  %675 = vmatprep.subr.mxu0 0.0
  %676 = vmatpush1.msra.mxu0 0.0
  %677 = vmatprep.subr.mxu0 0.0
  %678 = vmatpush1.msra.mxu0 0.0
  %679 = vmatprep.subr.mxu0 0.0
  %680 = vmatpush1.msra.mxu0 0.0
  %681 = vmatprep.subr.mxu0 0.0
  %682 = vmatpush1.msra.mxu0 0.0
  %683 = vmatprep.subr.mxu0 0.0
  %684 = vmatpush1.msra.mxu0 0.0
  %685 = vmatprep.subr.mxu0 0.0
  %686 = vmatpush1.msra.mxu0 0.0
  %687 = vmatprep.subr.mxu0 0.0
  %688 = vmatpush1.msra.mxu0 0.0
  %689 = vmatprep.subr.mxu0 0.0
  %690 = vmatpush1.msra.mxu0 0.0
  %691 = vmatprep.subr.mxu0 0.0
  %692 = vmatpush1.msra.mxu0 0.0
  %693 = vmatprep.subr.mxu0 0.0
  %694 = vmatpush1.msra.mxu0 0.0
  %695 = vmatprep.subr.mxu0 0.0
  %696 = vmatpush1.msra.mxu0 0.0
  %697 = vmatprep.subr.mxu0 0.0
  %698 = vmatpush1.msra.mxu0 0.0
  %699 = vmatprep.subr.mxu0 0.0
  %700 = vmatpush1.msra.mxu0 0.0
  %701 = vmatprep.mubr.f32.mxu0 0.0
  %702 = vmatmul.mubr.f32.gmra.mrb[0].mxu0 %v632
  %v703 = vpop.f32.mrb[0].mxu0
  %v704 = vadd.f32 %v630, %v703
  %v705 = vpop.f32.mrb[0].mxu0
  %706 = vmatprep.mubr.f32.mxu0 0.0
  %707 = vmatmul.mubr.f32.gmra.mrb[0].mxu0 %v635
  %v708 = vpop.f32.mrb[0].mxu0
  %v709 = vadd.f32 %v630, %v708
  %v710 = vpop.f32.mrb[0].mxu0
  %711 = vdwg.mxu0
  %v712 = vmax.f32 %v704, 0.0
  %v713 = vmax.f32 %v709, 0.0
  %v714 = vlaneseq
  %v715 = vshrl.u32 %v714, 7
  %v716 = vsub.s32 2, %v715
  %v717 = vrot.slane %v62, %v716
  %v719 = vsel %vm533, %v712, 0
  %v722 = vsel %vm533, %v713, 0
  %724 = vmatprep.subr.mxu0 0.0
  %725 = vmatpush1.msra.mxu0 %v58
  %726 = vmatprep.subr.mxu0 0.0
  %727 = vmatpush1.msra.mxu0 %v59
  %728 = vmatprep.subr.mxu0 0.0
  %729 = vmatpush1.msra.mxu0 %v60
  %730 = vmatprep.subr.mxu0 0.0
  %731 = vmatpush1.msra.mxu0 %v61
  %732 = vmatprep.subr.mxu0 0.0
  %733 = vmatpush1.msra.mxu0 0.0
  %734 = vmatprep.subr.mxu0 0.0
  %735 = vmatpush1.msra.mxu0 0.0
  %736 = vmatprep.subr.mxu0 0.0
  %737 = vmatpush1.msra.mxu0 0.0
  %738 = vmatprep.subr.mxu0 0.0
  %739 = vmatpush1.msra.mxu0 0.0
  %740 = vmatprep.subr.mxu0 0.0
  %741 = vmatpush1.msra.mxu0 0.0
  %742 = vmatprep.subr.mxu0 0.0
  %743 = vmatpush1.msra.mxu0 0.0
  %744 = vmatprep.subr.mxu0 0.0
  %745 = vmatpush1.msra.mxu0 0.0
  %746 = vmatprep.subr.mxu0 0.0
  %747 = vmatpush1.msra.mxu0 0.0
  %748 = vmatprep.subr.mxu0 0.0
  %749 = vmatpush1.msra.mxu0 0.0
  %750 = vmatprep.subr.mxu0 0.0
  %751 = vmatpush1.msra.mxu0 0.0
  %752 = vmatprep.subr.mxu0 0.0
  %753 = vmatpush1.msra.mxu0 0.0
  %754 = vmatprep.subr.mxu0 0.0
  %755 = vmatpush1.msra.mxu0 0.0
  %756 = vmatprep.subr.mxu0 0.0
  %757 = vmatpush1.msra.mxu0 0.0
  %758 = vmatprep.subr.mxu0 0.0
  %759 = vmatpush1.msra.mxu0 0.0
  %760 = vmatprep.subr.mxu0 0.0
  %761 = vmatpush1.msra.mxu0 0.0
  %762 = vmatprep.subr.mxu0 0.0
  %763 = vmatpush1.msra.mxu0 0.0
  %764 = vmatprep.subr.mxu0 0.0
  %765 = vmatpush1.msra.mxu0 0.0
  %766 = vmatprep.subr.mxu0 0.0
  %767 = vmatpush1.msra.mxu0 0.0
  %768 = vmatprep.subr.mxu0 0.0
  %769 = vmatpush1.msra.mxu0 0.0
  %770 = vmatprep.subr.mxu0 0.0
  %771 = vmatpush1.msra.mxu0 0.0
  %772 = vmatprep.subr.mxu0 0.0
  %773 = vmatpush1.msra.mxu0 0.0
  %774 = vmatprep.subr.mxu0 0.0
  %775 = vmatpush1.msra.mxu0 0.0
  %776 = vmatprep.subr.mxu0 0.0
  %777 = vmatpush1.msra.mxu0 0.0
  %778 = vmatprep.subr.mxu0 0.0
  %779 = vmatpush1.msra.mxu0 0.0
  %780 = vmatprep.subr.mxu0 0.0
  %781 = vmatpush1.msra.mxu0 0.0
  %782 = vmatprep.subr.mxu0 0.0
  %783 = vmatpush1.msra.mxu0 0.0
  %784 = vmatprep.subr.mxu0 0.0
  %785 = vmatpush1.msra.mxu0 0.0
  %786 = vmatprep.subr.mxu0 0.0
  %787 = vmatpush1.msra.mxu0 0.0
  %788 = vmatprep.mubr.f32.mxu0 0.0
  %789 = vmatmul.mubr.f32.gmra.mrb[0].mxu0 %v719
  %v790 = vpop.f32.mrb[0].mxu0
  %v791 = vadd.f32 %v717, %v790
  %v792 = vpop.f32.mrb[0].mxu0
  %793 = vmatprep.mubr.f32.mxu0 0.0
  %794 = vmatmul.mubr.f32.gmra.mrb[0].mxu0 %v722
  %v795 = vpop.f32.mrb[0].mxu0
  %v796 = vadd.f32 %v717, %v795
  %v797 = vpop.f32.mrb[0].mxu0
  %798 = vdwg.mxu0
  %vm799 = vcmask 31744
  %v800 = vsel %vm799, %v791, -inf
  %801 = vmax.xlane.f32.xlu0 %v800
  %v802 = vpop.xlane.xlu0 %801
  %v803 = vsel %vm799, %v796, -inf
  %804 = vmax.xlane.f32.xlu0 %v803
  %v805 = vpop.xlane.xlu0 %804
  %v806 = vsub.f32 %v791, %v802
  %v807 = vsub.f32 %v796, %v805
  %v808 = vmul.f32 %v806, 1.442695
  %v809 = vpow.pop %v808
  %v810 = vmul.f32 %v807, 1.442695
  %v811 = vpow.pop %v810
  %v812 = vsel %vm799, %v809, 0.0
  %813 = vadd.xlane.f32.xlu0 %v812
  %v814 = vpop.xlane.xlu0 %813
  %v815 = vsel %vm799, %v811, 0.0
  %816 = vadd.xlane.f32.xlu0 %v815
  %v817 = vpop.xlane.xlu0 %816
  %v818 = vrcp.pop %v814
  %v819 = vrcp.pop %v817
  %v820 = vmul.f32 %v809, %v818
  %v821 = vmul.f32 %v811, %v819
  %v822 = vld [vmem:[%s0 + $0x48] sm:$0xff]
  %v823 = vld [vmem:[%s0 + $0x98] sm:$0xff]
  %826 = vrot.lane.b32.xlu0 %v822, 8
  %v827 = vpop.permute.xlu0 %826
  %828 = vrot.lane.b32.xlu0 %v823, 8
  %v829 = vpop.permute.xlu0 %828
  %v832 = vmul.f32 %v791, %v827
  %v833 = vmul.f32 %v796, %v829
  %836 = vrot.lane.b32.xlu0 %v832, 108
  %v837 = vpop.permute.xlu0 %836
  %838 = vrot.lane.b32.xlu0 %v833, 108
  %v839 = vpop.permute.xlu0 %838
  %v842 = vadd.f32 %v822, %v837
  %v843 = vadd.f32 %v823, %v839
  %v844 = vmul.f32 %v791, 1.442695
  %v845 = vpow.pop %v844
  %v846 = vmul.f32 %v796, 1.442695
  %v847 = vpow.pop %v846
  %v848 = vmul.f32 %v845, %v827
  %v849 = vmul.f32 %v847, %v829
  %852 = vrot.lane.b32.xlu0 %v848, 96
  %v853 = vpop.permute.xlu0 %852
  %854 = vrot.lane.b32.xlu0 %v849, 96
  %v855 = vpop.permute.xlu0 %854
  %v858 = vadd.f32 %v842, %v853
  %v859 = vadd.f32 %v843, %v855
  %862 = vrot.lane.b32.xlu0 %v791, 64
  %v863 = vpop.permute.xlu0 %862
  %864 = vrot.lane.b32.xlu0 %v796, 64
  %v865 = vpop.permute.xlu0 %864
  %870 = vrot.lane.b32.xlu0 %v820, 83
  %v871 = vpop.permute.xlu0 %870
  %872 = vrot.lane.b32.xlu0 %v821, 83
  %v873 = vpop.permute.xlu0 %872
  %878 = vrot.lane.b32.xlu0 %v858, 87
  %v879 = vpop.permute.xlu0 %878
  %880 = vrot.lane.b32.xlu0 %v859, 87
  %v881 = vpop.permute.xlu0 %880
  %v884 = vsel %vm543, %v537, %v863
  %v885 = vsel %vm543, %v538, %v865
  %vm886 = vcmask 556032
  %v887 = vsel %vm886, %v884, %v863
  %v888 = vsel %vm886, %v885, %v865
  %vm889 = vcmask 687104
  %v890 = vsel %vm889, %v887, %v871
  %v891 = vsel %vm889, %v888, %v873
  %vm892 = vcmask 711680
  %v893 = vsel %vm892, %v890, %v879
  %v894 = vsel %vm892, %v891, %v881
  %vm895 = vcmask 809984
  %v896 = vsel %vm895, %v893, 0.0
  %v897 = vsel %vm895, %v894, 0.0
  %898 = vst [vmem:[%s3] sm:$0xff] %v896
  %899 = vst [vmem:[%s3 + $0x8] sm:$0xff] %v897
  // Predicated region
  $region14: #{roinet_forward.1} parent=0 // pred_check
    _
  $region15: #{roinet_forward.1} parent=0 // pred_check_branch
    %901 = sbr.rel (0) target = $region17
  $region16: #{roinet_forward.1} parent=0 // pred_region
    _
  $region17: #{roinet_forward.1} parent=0 // pred_fallthru
    _
  // Predicated region
  $region18: #{roinet_forward.1} parent=0 // pred_check
    _
  $region19: #{roinet_forward.1} parent=0 // pred_check_branch
    %903 = sbr.rel (0) target = $region21
  $region20: #{roinet_forward.1} parent=0 // pred_region
    _
  $region21: #{roinet_forward.1} parent=0 // pred_fallthru
    _

</llo_original>
